<compile_context>
chip_gen: v7x
topology: tpu7x:2x2x1
jax: 0.10.0
libtpu: 0.0.40
codegen_flags: <defaults>
</compile_context>

<pallas_src>
import jax
import jax.numpy as jnp
from jax.experimental import pallas as pl
from jax.experimental.pallas import tpu as pltpu


def _cdiv(a, b):
    return (a + b - 1) // b


def _round_up(a, b):
    return _cdiv(a, b) * b


def _pos_enc_broadcast_kernel(x_tab_ref, y_tab_ref, out_ref):
    """Fill one (4, c2, tile_h, W) output block from tiny sin/cos tables.

    x_tab_ref: VMEM (2, c2, tile_h, 1) f32 -- [sin_x, cos_x] rows for this H-tile
    y_tab_ref: VMEM (2, c2, 1,  W)     f32 -- [sin_y, cos_y]
    out_ref:   VMEM (4, c2, tile_h, W)     -- [sin_x, cos_x, sin_y, cos_y]

    All transcendentals were evaluated once on the O(c2*(H+W)) tables in the
    wrapper; in-kernel work is pure broadcast + store, so the kernel is
    HBM-writeback bound.  The cast (for bf16 output) is applied to the tiny
    table values, never to sin/cos arguments.
    """
    _, c2, tile_h, w = out_ref.shape
    dt = out_ref.dtype
    shape = (c2, tile_h, w)

    # One slab at a time: compute-broadcast then store, so at most one
    # (c2, tile_h, W) temporary is live at any point.
    out_ref[0] = jnp.broadcast_to(x_tab_ref[0].astype(dt), shape)  # sin_x (lane bcast)
    out_ref[1] = jnp.broadcast_to(x_tab_ref[1].astype(dt), shape)  # cos_x (lane bcast)
    out_ref[2] = jnp.broadcast_to(y_tab_ref[0].astype(dt), shape)  # sin_y (sublane bcast)
    out_ref[3] = jnp.broadcast_to(y_tab_ref[1].astype(dt), shape)  # cos_y (sublane bcast)


def _pick_tile_h(height, width, c2, out_itemsize, max_block_bytes):
    """Largest sublane-aligned H-tile within the VMEM block budget, with >=2
    grid steps when H can be split (dual-TC sharding on v7x)."""
    sub = 16 if out_itemsize < 4 else 8           # sublane granularity of out dtype
    row_bytes = 4 * c2 * width * out_itemsize      # one h-row of the output block
    tile = max(sub, (max_block_bytes // max(row_bytes, 1)) // sub * sub)
    if tile < height:
        return int(tile)
    half = _round_up(_cdiv(height, 2), sub)
    return int(half) if half < height else int(height)


def positional_encoding_2d(x, channels, height, width, *,
                           out_dtype=jnp.float32, max_block_bytes=4 << 20):
    """Pallas equivalent of PositionalEncoding2D.forward.

    `x` is only consulted for its batch dimension, exactly like the PyTorch
    module.  Returns (B, 2*channels_even, H, W) in `out_dtype` (default f32 to
    match the module; pass jnp.bfloat16 to halve HBM writeback).
    """
    batch = x.shape[0]
    ch_even = channels // 2 * 2
    c2 = ch_even // 2
    out_c = 4 * c2  # == 2 * ch_even
    itemsize = jnp.dtype(out_dtype).itemsize

    # --- tiny separable tables (same deterministic formula as the module) ----
    # 2*c2*(H+W) sin/cos total (negligible) instead of 4*c2*H*W in-kernel.
    inv_freq = 1.0 / (
        10000.0 ** (jnp.arange(0, ch_even, 2, dtype=jnp.float32) / ch_even)
    )                                                                # (c2,)
    phase_x = inv_freq[:, None] * jnp.arange(height, dtype=jnp.float32)[None, :]  # (c2, H)
    phase_y = inv_freq[:, None] * jnp.arange(width, dtype=jnp.float32)[None, :]   # (c2, W)
    x_tab = jnp.stack([jnp.sin(phase_x), jnp.cos(phase_x)])[..., None]        # (2, c2, H, 1)
    y_tab = jnp.stack([jnp.sin(phase_y), jnp.cos(phase_y)])[:, :, None, :]    # (2, c2, 1, W)

    # --- tiling / VMEM budget ------------------------------------------------
    tile_h = _pick_tile_h(height, width, c2, itemsize, max_block_bytes)
    grid_h = _cdiv(height, tile_h)

    out_block = 4 * c2 * tile_h * width * itemsize
    in_blocks = 2 * c2 * tile_h * 4 + 2 * c2 * width * 4
    vmem_needed = 2 * (out_block + in_blocks) + (4 << 20)
    # Only raise the scoped-VMEM limit when the chosen tiles actually need it
    # (e.g. a large max_block_bytes on v5e/v6e); otherwise keep the default.
    vmem_limit = int(vmem_needed) if vmem_needed > (16 << 20) else None

    flat = pl.pallas_call(
        _pos_enc_broadcast_kernel,
        out_shape=jax.ShapeDtypeStruct((4, c2, height, width), out_dtype),
        grid_spec=pltpu.PrefetchScalarGridSpec(
            num_scalar_prefetch=0,
            grid=(grid_h,),
            in_specs=[
                pl.BlockSpec((2, c2, tile_h, 1), lambda i: (0, 0, i, 0)),
                pl.BlockSpec((2, c2, 1, width), lambda i: (0, 0, 0, 0)),
            ],
            out_specs=pl.BlockSpec((4, c2, tile_h, width), lambda i: (0, 0, i, 0)),
        ),
        compiler_params=pltpu.CompilerParams(
            dimension_semantics=("parallel",),
            vmem_limit_bytes=vmem_limit,
        ),
    )(x_tab, y_tab)

    # (4, c2, H, W) -> (C_out, H, W): merging the leading dims is metadata only.
    emb = flat.reshape(1, out_c, height, width)
    # Batch-independent: keep batch size-1 until this broadcast, so XLA can fuse
    # it into the consumer instead of materializing B full HBM copies.
    return jnp.broadcast_to(emb, (batch, out_c, height, width))


def _reference(x, channels, height, width):
    """Pure-JAX reference (broadcast interpretation of the torch.cat)."""
    ch_even = channels // 2 * 2
    c2 = ch_even // 2
    inv_freq = 1.0 / (
        10000.0 ** (jnp.arange(0, ch_even, 2, dtype=jnp.float32) / ch_even)
    )
    pos_x = jnp.arange(height, dtype=jnp.float32)
    pos_y = jnp.arange(width, dtype=jnp.float32)
    sx = jnp.einsum("i,j->ij", pos_x, inv_freq)[:, None, :]  # (H,1,C2)
    sy = jnp.einsum("i,j->ij", pos_y, inv_freq)[None, :, :]  # (1,W,C2)
    sx = jnp.broadcast_to(sx, (height, width, c2))
    sy = jnp.broadcast_to(sy, (height, width, c2))
    emb = jnp.concatenate(
        [jnp.sin(sx), jnp.cos(sx), jnp.sin(sy), jnp.cos(sy)], axis=-1
    )
    emb = jnp.transpose(emb, (2, 0, 1))[None]  # (1, 2*ch_even, H, W)
    return jnp.broadcast_to(emb, (x.shape[0],) + emb.shape[1:])


if __name__ == "__main__":
    B, C, H, W = 2, 4, 16, 16
    key = jax.random.PRNGKey(0)
    x = jax.random.normal(key, (B, C, H, W), dtype=jnp.float32)

    # f32 path (matches the PyTorch module); tile picker gives 2 grid steps here.
    out = jax.block_until_ready(positional_encoding_2d(x, C, H, W))
    ref = _reference(x, C, H, W)
    assert out.shape == (B, 2 * C, H, W), out.shape
    assert out.dtype == jnp.float32
    assert jnp.allclose(out, ref, atol=1e-5), float(jnp.max(jnp.abs(out - ref)))

    # Tiled path with a partial last block (H not a multiple of the tile) and
    # non-128-multiple W: checks no padded-lane garbage leaks into valid rows.
    x2 = jax.random.normal(jax.random.PRNGKey(1), (1, 4, 20, 12), dtype=jnp.float32)
    out2 = jax.block_until_ready(positional_encoding_2d(x2, 4, 20, 12))
    ref2 = _reference(x2, 4, 20, 12)
    assert jnp.allclose(out2, ref2, atol=1e-5), float(jnp.max(jnp.abs(out2 - ref2)))

    # Optional bf16 writeback path (halves HBM write bytes; compute stays f32).
    out3 = jax.block_until_ready(
        positional_encoding_2d(x, C, H, W, out_dtype=jnp.bfloat16))
    assert out3.dtype == jnp.bfloat16
    assert jnp.allclose(out3.astype(jnp.float32), ref, atol=1e-2)

    print("KERNEL_OK")
</pallas_src>

<mosaic_0001>
module attributes {stable_mosaic.version = 11 : i64} {
  func.func @_pos_enc_broadcast_kernel(%arg0: i32, %arg1: memref<2x2x8x1xf32, #tpu.memory_space<vmem>>, %arg2: memref<2x2x1x16xf32, #tpu.memory_space<vmem>>, %arg3: memref<4x2x8x16xf32, #tpu.memory_space<vmem>>) attributes {dimension_semantics = [#tpu.dimension_semantics<parallel>], iteration_bounds = array<i64: 2>, scalar_prefetch = 0 : i64, scratch_operands = 0 : i64, tpu.core_type = #tpu.core_type<tc>, window_params = [{transform_indices = @transform_0, window_bounds = array<i64: 2, 2, 8, 1>}, {pipeline_mode = #tpu.pipeline_mode<synchronous>, transform_indices = @transform_1, window_bounds = array<i64: 2, 2, 1, 16>}, {transform_indices = @transform_2, window_bounds = array<i64: 4, 2, 8, 16>}]} {
    %c0 = arith.constant 0 : index
    %c0_0 = arith.constant 0 : index
    %c0_1 = arith.constant 0 : index
    %c0_2 = arith.constant 0 : index
    %0 = vector.load %arg1[%c0, %c0_0, %c0_1, %c0_2] : memref<2x2x8x1xf32, #tpu.memory_space<vmem>>, vector<1x2x8x1xf32>
    %1 = vector.shape_cast %0 : vector<1x2x8x1xf32> to vector<2x8x1xf32>
    %2 = vector.shape_cast %1 : vector<2x8x1xf32> to vector<2x8x1xf32>
    %3 = vector.broadcast %2 : vector<2x8x1xf32> to vector<2x8x16xf32>
    %c0_3 = arith.constant 0 : index
    %c0_4 = arith.constant 0 : index
    %c0_5 = arith.constant 0 : index
    %c0_6 = arith.constant 0 : index
    %4 = vector.load %arg3[%c0_3, %c0_4, %c0_5, %c0_6] : memref<4x2x8x16xf32, #tpu.memory_space<vmem>>, vector<1x2x8x16xf32>
    %5 = vector.shape_cast %4 : vector<1x2x8x16xf32> to vector<2x8x16xf32>
    %6 = vector.shape_cast %3 : vector<2x8x16xf32> to vector<1x2x8x16xf32>
    tpu.vector_store %arg3[%c0_3, %c0_4, %c0_5, %c0_6], %6 {strides = array<i32>} : memref<4x2x8x16xf32, #tpu.memory_space<vmem>>, vector<1x2x8x16xf32>,
    %c1 = arith.constant 1 : index
    %c0_7 = arith.constant 0 : index
    %c0_8 = arith.constant 0 : index
    %c0_9 = arith.constant 0 : index
    %7 = vector.load %arg1[%c1, %c0_7, %c0_8, %c0_9] : memref<2x2x8x1xf32, #tpu.memory_space<vmem>>, vector<1x2x8x1xf32>
    %8 = vector.shape_cast %7 : vector<1x2x8x1xf32> to vector<2x8x1xf32>
    %9 = vector.shape_cast %8 : vector<2x8x1xf32> to vector<2x8x1xf32>
    %10 = vector.broadcast %9 : vector<2x8x1xf32> to vector<2x8x16xf32>
    %c1_10 = arith.constant 1 : index
    %c0_11 = arith.constant 0 : index
    %c0_12 = arith.constant 0 : index
    %c0_13 = arith.constant 0 : index
    %11 = vector.load %arg3[%c1_10, %c0_11, %c0_12, %c0_13] : memref<4x2x8x16xf32, #tpu.memory_space<vmem>>, vector<1x2x8x16xf32>
    %12 = vector.shape_cast %11 : vector<1x2x8x16xf32> to vector<2x8x16xf32>
    %13 = vector.shape_cast %10 : vector<2x8x16xf32> to vector<1x2x8x16xf32>
    tpu.vector_store %arg3[%c1_10, %c0_11, %c0_12, %c0_13], %13 {strides = array<i32>} : memref<4x2x8x16xf32, #tpu.memory_space<vmem>>, vector<1x2x8x16xf32>,
    %c0_14 = arith.constant 0 : index
    %c0_15 = arith.constant 0 : index
    %c0_16 = arith.constant 0 : index
    %c0_17 = arith.constant 0 : index
    %14 = vector.load %arg2[%c0_14, %c0_15, %c0_16, %c0_17] : memref<2x2x1x16xf32, #tpu.memory_space<vmem>>, vector<1x2x1x16xf32>
    %15 = vector.shape_cast %14 : vector<1x2x1x16xf32> to vector<2x1x16xf32>
    %16 = vector.shape_cast %15 : vector<2x1x16xf32> to vector<2x1x16xf32>
    %17 = vector.broadcast %16 : vector<2x1x16xf32> to vector<2x8x16xf32>
    %c2 = arith.constant 2 : index
    %c0_18 = arith.constant 0 : index
    %c0_19 = arith.constant 0 : index
    %c0_20 = arith.constant 0 : index
    %18 = vector.load %arg3[%c2, %c0_18, %c0_19, %c0_20] : memref<4x2x8x16xf32, #tpu.memory_space<vmem>>, vector<1x2x8x16xf32>
    %19 = vector.shape_cast %18 : vector<1x2x8x16xf32> to vector<2x8x16xf32>
    %20 = vector.shape_cast %17 : vector<2x8x16xf32> to vector<1x2x8x16xf32>
    tpu.vector_store %arg3[%c2, %c0_18, %c0_19, %c0_20], %20 {strides = array<i32>} : memref<4x2x8x16xf32, #tpu.memory_space<vmem>>, vector<1x2x8x16xf32>,
    %c1_21 = arith.constant 1 : index
    %c0_22 = arith.constant 0 : index
    %c0_23 = arith.constant 0 : index
    %c0_24 = arith.constant 0 : index
    %21 = vector.load %arg2[%c1_21, %c0_22, %c0_23, %c0_24] : memref<2x2x1x16xf32, #tpu.memory_space<vmem>>, vector<1x2x1x16xf32>
    %22 = vector.shape_cast %21 : vector<1x2x1x16xf32> to vector<2x1x16xf32>
    %23 = vector.shape_cast %22 : vector<2x1x16xf32> to vector<2x1x16xf32>
    %24 = vector.broadcast %23 : vector<2x1x16xf32> to vector<2x8x16xf32>
    %c3 = arith.constant 3 : index
    %c0_25 = arith.constant 0 : index
    %c0_26 = arith.constant 0 : index
    %c0_27 = arith.constant 0 : index
    %25 = vector.load %arg3[%c3, %c0_25, %c0_26, %c0_27] : memref<4x2x8x16xf32, #tpu.memory_space<vmem>>, vector<1x2x8x16xf32>
    %26 = vector.shape_cast %25 : vector<1x2x8x16xf32> to vector<2x8x16xf32>
    %27 = vector.shape_cast %24 : vector<2x8x16xf32> to vector<1x2x8x16xf32>
    tpu.vector_store %arg3[%c3, %c0_25, %c0_26, %c0_27], %27 {strides = array<i32>} : memref<4x2x8x16xf32, #tpu.memory_space<vmem>>, vector<1x2x8x16xf32>,
    return
  }
  func.func @transform_0(%arg0: i32) -> (i32, i32, i32, i32) {
    %c0_i32 = arith.constant 0 : i32
    %c0_i32_0 = arith.constant 0 : i32
    %c0_i32_1 = arith.constant 0 : i32
    %c0_i32_2 = arith.constant 0 : i32
    return %c0_i32, %c0_i32_0, %arg0, %c0_i32_1 : i32, i32, i32, i32
  }
  func.func @transform_1(%arg0: i32) -> (i32, i32, i32, i32) {
    %c0_i32 = arith.constant 0 : i32
    %c0_i32_0 = arith.constant 0 : i32
    %c0_i32_1 = arith.constant 0 : i32
    %c0_i32_2 = arith.constant 0 : i32
    %c0_i32_3 = arith.constant 0 : i32
    return %c0_i32, %c0_i32_0, %c0_i32_1, %c0_i32_2 : i32, i32, i32, i32
  }
  func.func @transform_2(%arg0: i32) -> (i32, i32, i32, i32) {
    %c0_i32 = arith.constant 0 : i32
    %c0_i32_0 = arith.constant 0 : i32
    %c0_i32_1 = arith.constant 0 : i32
    %c0_i32_2 = arith.constant 0 : i32
    return %c0_i32, %c0_i32_0, %arg0, %c0_i32_1 : i32, i32, i32, i32
  }
}

</mosaic_0001>

<llo_original>
// kernel: tpu_custom_call.1
$region0: #{tpu_custom_call.1}
  #allocation0 [shape = 'u32[]', space=smem, size = 0x4, offset = 0x4, fixed_abs, tag = 'smem constant byte address 0x4 - core index']
  #allocation1 [shape = 'u32[144,128]{1,0:T(1,128)}', space=vmem, size = 0x12000, scoped, tag = 'internal scratch']
  %s0 = inlined_call_operand.vmem [shape: f32[2,2,16,1], index: 0, kind: input, shape index: {}]
  %s1 = inlined_call_operand.vmem [shape: f32[2,2,1,16], index: 1, kind: input, shape index: {}]
  %s2 = inlined_call_operand.hbm [shape: f32[4,2,16,16], index: 2, kind: output, shape index: {}]
  %s3 = sld [smem:[#allocation0]]
  $region79: #{tpu_custom_call.1} parent=0
    _
  %s5 = ssub.s32 1, %s3
  %s6 = scalar_select 0, %s5, %s3
  $region1: #{tpu_custom_call.1} parent=0
    #allocation2 [shape = 'u8[32768]{0}', space=vmem, size = 0x8000, scoped, tag = 'input window, operand 0']
    #allocation3 [shape = 'u8[65536]{0}', space=vmem, size = 0x10000, scoped, tag = 'output window, operand 0']
    #allocation4 [shape = 's32[2]{0}', space=sflag, size = 0x8, scoped, tag = 'scoped memory for tpu_custom_call.1']
    %7 = vsyncpa [#allocation4], 0
    %s8 = scalar_lea.sflag [#allocation4], 1
    %9 = vsyncpa %s8, 0
    loop: start=0, step=1, limit=4
    $region2: #{tpu_custom_call.1} parent=1 // loop_pre_header
      _
    $region3: #{tpu_custom_call.1} parent=1 // loop_header
      %s11 = sphi 0, %s15
      %p12 = scmp.ge.s32.totalorder %s11, 4
      %s21 = sphi 0, %s23
      %s24 = sphi 0, %s21
      %s25 = sphi 0, %s24
      %s41 = sphi 0, %s25
      %s45 = sphi 0, %s45
      %s47 = sphi 0, %s45
      %s48 = sphi 0, %s47
      %s62 = sphi 0, %s48
      %s68 = sphi 0, %s70
      %s71 = sphi 0, %s68
      %s72 = sphi 0, %s71
      %s88 = sphi 0, %s72
    $region4: #{tpu_custom_call.1} parent=1 // loop_header_branch
      %14 = sbr.rel (%p12) target = $region8
    $region5: #{tpu_custom_call.1} parent=1 // loop_body
      %s16 = ssub.s32 %s11, 1
      %s17 = ssub.s32 %s11, 2
      %s18 = sadd.s32 %s11, 1
      %s19 = ssub.s32 %s11, %s18
      %p20 = scmp.eq.s32.totalorder %s19, 0
      %s22 = sadd.s32 %s21, 1
      %s23 = scalar_select %p20, %s21, %s22
      %p26 = pneg %p20
      %p27 = scmp.eq.s32.totalorder %s11, 1
      %p28 = por %p26, %p27
      %p29 = scmp.ne.s32.totalorder %s21, %s24
      %p30 = scmp.eq.s32.totalorder %s11, 0
      %p31 = por %p29, %p30
      %p32 = scmp.ne.s32.totalorder %s21, %s24
      %p33 = scmp.eq.s32.totalorder %s16, 1
      %p34 = por %p32, %p33
      %p35 = scmp.ne.s32.totalorder %s24, %s25
      %p36 = scmp.eq.s32.totalorder %s16, 0
      %p37 = por %p35, %p36
      %p38 = scmp.ne.s32.totalorder %s24, %s25
      %p39 = scmp.eq.s32.totalorder %s17, 1
      %p40 = por %p38, %p39
      %p42 = scmp.ne.s32.totalorder %s25, %s41
      %p43 = scmp.eq.s32.totalorder %s17, 0
      %p44 = por %p42, %p43
      %s46 = sadd.s32 %s45, 1
      %p49 = scmp.eq.s32.totalorder %s11, 1
      %p50 = scmp.ne.s32.totalorder %s45, %s47
      %p51 = scmp.eq.s32.totalorder %s11, 0
      %p52 = por %p50, %p51
      %p53 = scmp.ne.s32.totalorder %s45, %s47
      %p54 = scmp.eq.s32.totalorder %s16, 1
      %p55 = por %p53, %p54
      %p56 = scmp.ne.s32.totalorder %s47, %s48
      %p57 = scmp.eq.s32.totalorder %s16, 0
      %p58 = por %p56, %p57
      %p59 = scmp.ne.s32.totalorder %s47, %s48
      %p60 = scmp.eq.s32.totalorder %s17, 1
      %p61 = por %p59, %p60
      %p63 = scmp.ne.s32.totalorder %s48, %s62
      %p64 = scmp.eq.s32.totalorder %s17, 0
      %p65 = por %p63, %p64
      %s66 = ssub.s32 %s11, %s18
      %p67 = scmp.eq.s32.totalorder %s66, 0
      %s69 = sadd.s32 %s68, 1
      %s70 = scalar_select %p67, %s68, %s69
      %p73 = pneg %p67
      %p74 = scmp.eq.s32.totalorder %s11, 1
      %p75 = por %p73, %p74
      %p76 = scmp.ne.s32.totalorder %s68, %s71
      %p77 = scmp.eq.s32.totalorder %s11, 0
      %p78 = por %p76, %p77
      %p79 = scmp.ne.s32.totalorder %s68, %s71
      %p80 = scmp.eq.s32.totalorder %s16, 1
      %p81 = por %p79, %p80
      %p82 = scmp.ne.s32.totalorder %s71, %s72
      %p83 = scmp.eq.s32.totalorder %s16, 0
      %p84 = por %p82, %p83
      %p85 = scmp.ne.s32.totalorder %s71, %s72
      %p86 = scmp.eq.s32.totalorder %s17, 1
      %p87 = por %p85, %p86
      %p89 = scmp.ne.s32.totalorder %s72, %s88
      %p90 = scmp.eq.s32.totalorder %s17, 0
      %p91 = por %p89, %p90
      %p92 = scmp.le.s32.totalorder 1, %s11
      %p93 = scmp.lt.s32.totalorder %s11, 3
      %p94 = pnand %p92, %p93
      %p95 = pneg %p94
      // Predicated region
      $region9: #{tpu_custom_call.1} parent=5 // pred_check
        _
      $region10: #{tpu_custom_call.1} parent=5 // pred_check_branch
        %97 = sbr.rel (%p94) target = $region12
      $region11: #{tpu_custom_call.1} parent=5 // pred_region
        %s98 = ssub.s32 %s11, 1
        // Predicated region
        $region13: #{tpu_custom_call.1} parent=11 // pred_check
          %p99 = pneg %p58
        $region14: #{tpu_custom_call.1} parent=11 // pred_check_branch
          %101 = sbr.rel (%p99) target = $region16
        $region15: #{tpu_custom_call.1} parent=11 // pred_region
          _
        $region16: #{tpu_custom_call.1} parent=11 // pred_fallthru
          _
      $region12: #{tpu_custom_call.1} parent=5 // pred_fallthru
        _
      %p102 = scmp.lt.s32.totalorder %s11, 2
      // Predicated region
      $region17: #{tpu_custom_call.1} parent=5 // pred_check
        %p103 = pneg %p102
      $region18: #{tpu_custom_call.1} parent=5 // pred_check_branch
        %105 = sbr.rel (%p103) target = $region20
      $region19: #{tpu_custom_call.1} parent=5 // pred_region
        // Predicated region
        $region21: #{tpu_custom_call.1} parent=19 // pred_check
          %p106 = pneg %p31
        $region22: #{tpu_custom_call.1} parent=19 // pred_check_branch
          %108 = sbr.rel (%p106) target = $region24
        $region23: #{tpu_custom_call.1} parent=19 // pred_region
          %s109 = sand.u32 %s21, 1
          %s110 = sand.u32 %s21, 1
          %s111 = smul.addr %s110, 32
          %s112 = scalar_lea.vmem [#allocation2], %s111
          %s113 = smul.addr %s11, 8
          %s114 = scalar_lea.vmem %s0, %s113
          // Predicated region
          $region25: #{tpu_custom_call.1} parent=23 // pred_check
            _
          $region26: #{tpu_custom_call.1} parent=23 // pred_check_branch
            %116 = sbr.rel (0) target = $region28
          $region27: #{tpu_custom_call.1} parent=23 // pred_region
            // Predicated region
            $region29: #{tpu_custom_call.1} parent=27 // pred_check
              _
            $region30: #{tpu_custom_call.1} parent=27 // pred_check_branch
              %118 = sbr.rel (0) target = $region32
            $region31: #{tpu_custom_call.1} parent=27 // pred_region
              // Predicated region
              $region44: #{tpu_custom_call.1} parent=31 // pred_check
                _
              $region45: #{tpu_custom_call.1} parent=31 // pred_check_branch
                %139 = sbr.rel (0) target = $region47
              $region46: #{tpu_custom_call.1} parent=31 // pred_region
                loop: start=0, step=1, limit=1
                $region48: #{tpu_custom_call.1} parent=46 // loop_pre_header
                  _
                $region49: #{tpu_custom_call.1} parent=46 // loop_header
                  %s141 = sphi 0, %s145
                  %p142 = scmp.ge.s32.totalorder %s141, 1
                  %s146 = sphi %s114, %s114
                  %s147 = sphi %s112, %s112
                $region50: #{tpu_custom_call.1} parent=46 // loop_header_branch
                  %144 = sbr.rel (%p142) target = $region54
                $region51: #{tpu_custom_call.1} parent=46 // loop_body
                  %v148 = vld [vmem:[%s146] sm:$0xff]
                  %149 = vst [vmem:[%s147] sm:$0xff] %v148
                  %v150 = vld [vmem:[%s146 + $0x10] sm:$0xff]
                  %151 = vst [vmem:[%s147 + $0x8] sm:$0xff] %v150
                  %v152 = vld [vmem:[%s146 + $0x20] sm:$0xff]
                  %153 = vst [vmem:[%s147 + $0x10] sm:$0xff] %v152
                  %v154 = vld [vmem:[%s146 + $0x30] sm:$0xff]
                  %155 = vst [vmem:[%s147 + $0x18] sm:$0xff] %v154
                $region52: #{tpu_custom_call.1} parent=46 // loop_footer
                  %s145 = sadd.s32 1, %s141
                $region53: #{tpu_custom_call.1} parent=46 // loop_footer_branch
                  %140 = sbr.rel target = $region49
                $region54: #{tpu_custom_call.1} parent=46 // loop_exit
                  _
              $region47: #{tpu_custom_call.1} parent=31 // pred_fallthru
                _
              // Predicated region
              $region55: #{tpu_custom_call.1} parent=31 // pred_check
                _
              $region56: #{tpu_custom_call.1} parent=31 // pred_check_branch
                %157 = sbr.rel target = $region58
              $region57: #{tpu_custom_call.1} parent=31 // pred_region
                _
              $region58: #{tpu_custom_call.1} parent=31 // pred_fallthru
                _
            $region32: #{tpu_custom_call.1} parent=27 // pred_fallthru
              _
            // Predicated region
            $region33: #{tpu_custom_call.1} parent=27 // pred_check
              _
            $region34: #{tpu_custom_call.1} parent=27 // pred_check_branch
              %120 = sbr.rel target = $region36
            $region35: #{tpu_custom_call.1} parent=27 // pred_region
              loop: start=0, step=1, limit=1
              $region37: #{tpu_custom_call.1} parent=35 // loop_pre_header
                _
              $region38: #{tpu_custom_call.1} parent=35 // loop_header
                %s123 = sphi 0, %s127
                %p124 = scmp.ge.s32.totalorder %s123, 1
                %s128 = sphi %s114, %s114
                %s129 = sphi %s112, %s112
              $region39: #{tpu_custom_call.1} parent=35 // loop_header_branch
                %126 = sbr.rel (%p124) target = $region43
              $region40: #{tpu_custom_call.1} parent=35 // loop_body
                %v130 = vld [vmem:[%s128] sm:$0xff]
                %131 = vst [vmem:[%s129] sm:$0xff] %v130
                %v132 = vld [vmem:[%s128 + $0x10] sm:$0xff]
                %133 = vst [vmem:[%s129 + $0x8] sm:$0xff] %v132
                %v134 = vld [vmem:[%s128 + $0x20] sm:$0xff]
                %135 = vst [vmem:[%s129 + $0x10] sm:$0xff] %v134
                %v136 = vld [vmem:[%s128 + $0x30] sm:$0xff]
                %137 = vst [vmem:[%s129 + $0x18] sm:$0xff] %v136
              $region41: #{tpu_custom_call.1} parent=35 // loop_footer
                %s127 = sadd.s32 1, %s123
              $region42: #{tpu_custom_call.1} parent=35 // loop_footer_branch
                %122 = sbr.rel target = $region38
              $region43: #{tpu_custom_call.1} parent=35 // loop_exit
                _
            $region36: #{tpu_custom_call.1} parent=27 // pred_fallthru
              _
          $region28: #{tpu_custom_call.1} parent=23 // pred_fallthru
            _
          %158 = vnop
        $region24: #{tpu_custom_call.1} parent=19 // pred_fallthru
          _
      $region20: #{tpu_custom_call.1} parent=5 // pred_fallthru
        _
      %p159 = scmp.le.s32.totalorder 1, %s11
      %p160 = scmp.lt.s32.totalorder %s11, 3
      %p161 = pnand %p159, %p160
      %p162 = pneg %p161
      // Predicated region
      $region59: #{tpu_custom_call.1} parent=5 // pred_check
        _
      $region60: #{tpu_custom_call.1} parent=5 // pred_check_branch
        %164 = sbr.rel (%p161) target = $region62
      $region61: #{tpu_custom_call.1} parent=5 // pred_region
        %s165 = ssub.s32 %s11, 1
        %s166 = sand.u32 %s24, 1
        %s167 = sand.u32 %s24, 1
        %s168 = smul.addr %s167, 32
        %s169 = scalar_lea.vmem [#allocation2], %s168
        // Predicated region
        $region63: #{tpu_custom_call.1} parent=61 // pred_check
          %p170 = pneg %p37
        $region64: #{tpu_custom_call.1} parent=61 // pred_check_branch
          %172 = sbr.rel (%p170) target = $region66
        $region65: #{tpu_custom_call.1} parent=61 // pred_region
          _
        $region66: #{tpu_custom_call.1} parent=61 // pred_fallthru
          _
        %s173 = sand.u32 %s24, 1
        %s174 = sand.u32 %s24, 1
        %s175 = smul.addr %s174, 32
        %s176 = scalar_lea.vmem [#allocation2], %s175
        %p177 = pneg %p37
        %p178 = pneg %p34
        %p179 = pneg %p58
        %p180 = pneg %p55
        %p181 = pneg %p84
        %p182 = pneg %p81
        %s183 = sand.u32 %s71, 1
        %s184 = scalar_lea.sflag [#allocation4], %s183
        %s185 = sand.u32 %s71, 1
        %s186 = smul.addr %s185, 64
        %s187 = scalar_lea.vmem [#allocation3], %s186
        %v188 = vld [vmem:[%s169] sm:$0xff]
        %v189 = vld [vmem:[%s169 + $0x8] sm:$0xff]
        %191 = vset.pattern.permute.xlu0 0
        %192 = vperm.xlu0 %191, %v188
        %v193 = vpop.permute.xlu0 %192
        %196 = vset.pattern.permute.xlu0 0
        %197 = vperm.xlu0 %196, %v189
        %v198 = vpop.permute.xlu0 %197
        %vm200 = vcmask 130048
        %201 = vst.msk [vmem:[%s187] sm:$0xff] %vm200, %v193
        %202 = vst.msk [vmem:[%s187 + $0x8] sm:$0xff] %vm200, %v198
        %s203 = scalar_lea.vmem %s169, 16 [#allocation2]
        %v204 = vld [vmem:[%s203] sm:$0xff]
        %v205 = vld [vmem:[%s203 + $0x8] sm:$0xff]
        %207 = vset.pattern.permute.xlu0 0
        %208 = vperm.xlu0 %207, %v204
        %v209 = vpop.permute.xlu0 %208
        %212 = vset.pattern.permute.xlu0 0
        %213 = vperm.xlu0 %212, %v205
        %v214 = vpop.permute.xlu0 %213
        %s216 = scalar_lea.vmem %s187, 16 [#allocation3]
        %217 = vst.msk [vmem:[%s216] sm:$0xff] %vm200, %v209
        %218 = vst.msk [vmem:[%s216 + $0x8] sm:$0xff] %vm200, %v214
        %v219 = vld [vmem:[%s1] sm:$0x1]
        %v220 = vld [vmem:[%s1 + $0x1] sm:$0x1]
        %v223 = vlaneseq
        %v224 = vshrl.u32 %v223, 7
        %v225 = vsub.s32 0, %v224
        %v226 = vrot.slane %v219, %v225
        %v227 = vlaneseq
        %v228 = vshrl.u32 %v227, 7
        %v229 = vsub.s32 0, %v228
        %v230 = vrot.slane %v220, %v229
        %s233 = scalar_lea.vmem %s187, 32 [#allocation3]
        %234 = vst.msk [vmem:[%s233] sm:$0xff] %vm200, %v226
        %235 = vst.msk [vmem:[%s233 + $0x8] sm:$0xff] %vm200, %v230
        %s236 = scalar_lea.vmem %s1, 2
        %v237 = vld [vmem:[%s236] sm:$0x1]
        %v238 = vld [vmem:[%s236 + $0x1] sm:$0x1]
        %v241 = vlaneseq
        %v242 = vshrl.u32 %v241, 7
        %v243 = vsub.s32 0, %v242
        %v244 = vrot.slane %v237, %v243
        %v245 = vlaneseq
        %v246 = vshrl.u32 %v245, 7
        %v247 = vsub.s32 0, %v246
        %v248 = vrot.slane %v238, %v247
        %s251 = scalar_lea.vmem %s187, 48 [#allocation3]
        %252 = vst.msk [vmem:[%s251] sm:$0xff] %vm200, %v244
        %253 = vst.msk [vmem:[%s251 + $0x8] sm:$0xff] %vm200, %v248
        %s254 = sand.u32 %s71, 1
        %s255 = scalar_lea.sflag [#allocation4], %s254
        %s256 = sand.u32 %s71, 1
        %s257 = smul.addr %s256, 64
        %s258 = scalar_lea.vmem [#allocation3], %s257
        // Predicated region
        $region67: #{tpu_custom_call.1} parent=61 // pred_check
          %p259 = pneg %p81
        $region68: #{tpu_custom_call.1} parent=61 // pred_check_branch
          %261 = sbr.rel (%p259) target = $region70
        $region69: #{tpu_custom_call.1} parent=61 // pred_region
          %s263 = ssub.s32 1024, 1024
          %264 = vsyncadd %s255, %s263
          %s265 = smul.addr %s16, 128
          %s266 = scalar_lea.hbm %s2, %s265
          %s267 = sshll.u32 %s258, 4
          %s268 = int_to_ptr.vmem [resolvable:$true] %s267
          %273 = dma.vmem_to_hbm [thread:$0]  %s268, 1024, %s266, %s255, 128, 256, 8
        $region70: #{tpu_custom_call.1} parent=61 // pred_fallthru
          _
      $region62: #{tpu_custom_call.1} parent=5 // pred_fallthru
        _
      %p274 = scmp.le.s32.totalorder 2, %s11
      // Predicated region
      $region71: #{tpu_custom_call.1} parent=5 // pred_check
        %p275 = pneg %p274
      $region72: #{tpu_custom_call.1} parent=5 // pred_check_branch
        %277 = sbr.rel (%p275) target = $region74
      $region73: #{tpu_custom_call.1} parent=5 // pred_region
        %s278 = ssub.s32 %s11, 2
        // Predicated region
        $region75: #{tpu_custom_call.1} parent=73 // pred_check
          %p279 = pneg %p87
        $region76: #{tpu_custom_call.1} parent=73 // pred_check_branch
          %281 = sbr.rel (%p279) target = $region78
        $region77: #{tpu_custom_call.1} parent=73 // pred_region
          %s282 = sand.u32 %s72, 1
          %s283 = scalar_lea.sflag [#allocation4], %s282
          %s284 = sand.u32 %s72, 1
          %s285 = smul.addr %s284, 64
          %s286 = scalar_lea.vmem [#allocation3], %s285
          %287 = dma.done %s283, 1024
        $region78: #{tpu_custom_call.1} parent=73 // pred_fallthru
          _
      $region74: #{tpu_custom_call.1} parent=5 // pred_fallthru
        _
    $region6: #{tpu_custom_call.1} parent=1 // loop_footer
      %s15 = sadd.s32 1, %s11
    $region7: #{tpu_custom_call.1} parent=1 // loop_footer_branch
      %10 = sbr.rel target = $region3
    $region8: #{tpu_custom_call.1} parent=1 // loop_exit
      _
    %288 = vsyncpa [#allocation4], 1
    %s289 = scalar_lea.sflag [#allocation4], 1
    %290 = vsyncpa %s289, 1

</llo_original>
